<compile_context>
chip_gen: v6e
topology: v6e:2x2x1
jax: 0.10.0
libtpu: 0.0.40
codegen_flags: <defaults>
</compile_context>

<pallas_src>
import functools

import jax
import jax.numpy as jnp
from jax import lax
from jax.experimental import pallas as pl
from jax.experimental.pallas import tpu as pltpu

_LANE = 128
_SUBLANE = 8
# Per-step VMEM budget for the double-buffered row-tile blocks.  Conservative
# for v5e's 16 MiB default scoped VMEM; irrelevant slack on v6e/v7x.
_VMEM_TILE_BUDGET = 8 << 20


def _round_up(x: int, m: int) -> int:
    return ((x + m - 1) // m) * m


def _derive_tile_m(n: int, k: int, c: int) -> int:
    """Row-tile size: as large as the VMEM budget allows, but split into at
    least 2 grid steps (v7x megacore) whenever there is >1 sublane of rows."""
    n_rows = _round_up(max(n, 1), _SUBLANE)
    # Blocks live in VMEM lane-padded to 128 lanes and double-buffered:
    #   h block   -> tm * round_up(K,128) * 4 B * 2
    #   out block -> tm * round_up(C,128) * 4 B * 2
    bytes_per_row = (_round_up(k, _LANE) + _round_up(c, _LANE)) * 4 * 2
    tm = max(_SUBLANE, (_VMEM_TILE_BUDGET // bytes_per_row) // _SUBLANE * _SUBLANE)
    if n_rows > _SUBLANE:
        # v7x has 2 TensorCores sharding "parallel" grid axes; make sure the
        # 1-D row grid has at least 2 steps so a mid-size N uses both.
        half = _round_up(pl.cdiv(n_rows, 2), _SUBLANE)
        tm = min(tm, half)
    return min(tm, n_rows)


def _cluster_kernel(h_ref, w_ref, b_ref, o_ref):
    """One row tile: logits = h @ W + b, then softmax over the feature axis."""
    h = h_ref[...]                                   # (tm, K)
    w = w_ref[...]                                   # (K,  C)
    b = b_ref[...].astype(jnp.float32)               # (1,  C)

    # Linear layer on the MXU; f32 accumulation, pinned to full f32 precision
    # (MXU has enormous slack at K=32/C=16, so the multi-pass cost is free).
    logits = jnp.dot(
        h, w,
        preferred_element_type=jnp.float32,
        precision=lax.Precision.HIGHEST,
    ) + b

    # Numerically-stable softmax over dim=1 (the feature axis), in f32.
    m = jnp.max(logits, axis=-1, keepdims=True)
    e = jnp.exp(logits - m)
    denom = jnp.sum(e, axis=-1, keepdims=True)
    # Exact divide (NOT pl.reciprocal(approx=True)): the approximate
    # reciprocal's ~2^-12 relative error broke exact row normalization and
    # the 1e-4 tolerance checks.  One divide per element is negligible here.
    probs = e / denom

    # TODO(synk): lane-dense store / transposed softmax (see header) left out.
    o_ref[...] = probs.astype(o_ref.dtype)


@functools.partial(jax.jit, static_argnames=("tile_m",))
def cluster_layer(h, weight, bias, *, tile_m=None):
    """softmax(h @ weight + bias, axis=1) via a Pallas TPU kernel.

    h:      (N, in_dims)
    weight: (in_dims, out_dims)   (transposed vs torch's (out_dims, in_dims))
    bias:   (out_dims,) or (1, out_dims)
    """
    N, K = h.shape
    Kw, C = weight.shape
    assert Kw == K, "weight must be (in_dims, out_dims)"
    bias = bias.reshape(1, C)

    if tile_m is None:
        tm = _derive_tile_m(N, K, C)
    else:
        tm = min(_round_up(tile_m, _SUBLANE), _round_up(N, _SUBLANE))

    # No wrapper-side padding / slicing: grid = cdiv(N, tm) and Pallas masks
    # the ragged edge block (rows are independent, so garbage in the unused
    # tail of the last block never touches valid output rows).
    grid = (pl.cdiv(N, tm),)

    return pl.pallas_call(
        _cluster_kernel,
        out_shape=jax.ShapeDtypeStruct((N, C), h.dtype),
        grid_spec=pltpu.PrefetchScalarGridSpec(
            num_scalar_prefetch=0,
            grid=grid,
            in_specs=[
                pl.BlockSpec((tm, K), lambda i: (i, 0)),   # row tile of h
                pl.BlockSpec((K, C), lambda i: (0, 0)),    # full weight, resident
                pl.BlockSpec((1, C), lambda i: (0, 0)),    # full bias, resident
            ],
            out_specs=pl.BlockSpec((tm, C), lambda i: (i, 0)),
        ),
        compiler_params=pltpu.CompilerParams(
            # Rows are independent -> shards across v7x's two TensorCores.
            dimension_semantics=("parallel",),
        ),
    )(h, weight, bias)


def _reference(h, weight, bias):
    logits = jnp.dot(h, weight, precision=lax.Precision.HIGHEST) + bias.reshape(1, -1)
    return jax.nn.softmax(logits, axis=1)


if __name__ == "__main__":
    key = jax.random.PRNGKey(0)
    k_h, k_w, k_b, k_h2 = jax.random.split(key, 4)

    # Small shapes consistent with Cluster_layer(in_dims, out_dims).
    N, in_dims, out_dims = 64, 32, 16

    h = jax.random.normal(k_h, (N, in_dims), dtype=jnp.float32)

    # Deterministic init mimicking nn.Linear default (uniform +-1/sqrt(in_dims)).
    bound = in_dims ** -0.5
    weight = jax.random.uniform(
        k_w, (in_dims, out_dims), minval=-bound, maxval=bound, dtype=jnp.float32
    )
    bias = jax.random.uniform(
        k_b, (1, out_dims), minval=-bound, maxval=bound, dtype=jnp.float32
    )

    # Case 1: small N -> 2-step grid (megacore-friendly), no padding needed.
    out = jax.block_until_ready(cluster_layer(h, weight, bias))
    ref = _reference(h, weight, bias)
    assert out.shape == (N, out_dims)
    err = float(jnp.max(jnp.abs(out - ref)))
    assert jnp.allclose(out, ref, atol=1e-4, rtol=1e-4), f"max err {err}"
    assert jnp.allclose(jnp.sum(out, axis=1), 1.0, atol=1e-4)

    # Case 2: ragged N -> partial edge block, no wrapper pad / slice.
    N2 = 1000
    h2 = jax.random.normal(k_h2, (N2, in_dims), dtype=jnp.float32)
    out2 = jax.block_until_ready(cluster_layer(h2, weight, bias))
    ref2 = _reference(h2, weight, bias)
    assert out2.shape == (N2, out_dims)
    err2 = float(jnp.max(jnp.abs(out2 - ref2)))
    assert jnp.allclose(out2, ref2, atol=1e-4, rtol=1e-4), f"max err {err2}"
    assert jnp.allclose(jnp.sum(out2, axis=1), 1.0, atol=1e-4)

    print("KERNEL_OK")
</pallas_src>

<mosaic_0001>
module attributes {stable_mosaic.version = 11 : i64} {
  func.func @_cluster_kernel(%arg0: i32, %arg1: memref<32x32xf32, #tpu.memory_space<vmem>>, %arg2: memref<32x16xf32, #tpu.memory_space<vmem>>, %arg3: memref<1x16xf32, #tpu.memory_space<vmem>>, %arg4: memref<32x16xf32, #tpu.memory_space<vmem>>) attributes {dimension_semantics = [#tpu.dimension_semantics<parallel>], iteration_bounds = array<i64: 2>, scalar_prefetch = 0 : i64, scratch_operands = 0 : i64, tpu.core_type = #tpu.core_type<tc>, window_params = [{transform_indices = @transform_0, window_bounds = array<i64: 32, 32>}, {pipeline_mode = #tpu.pipeline_mode<synchronous>, transform_indices = @transform_1, window_bounds = array<i64: 32, 16>}, {pipeline_mode = #tpu.pipeline_mode<synchronous>, transform_indices = @transform_2, window_bounds = array<i64: 1, 16>}, {transform_indices = @transform_3, window_bounds = array<i64: 32, 16>}]} {
    %c0 = arith.constant 0 : index
    %c0_0 = arith.constant 0 : index
    %0 = vector.load %arg1[%c0, %c0_0] : memref<32x32xf32, #tpu.memory_space<vmem>>, vector<32x32xf32>
    %c0_1 = arith.constant 0 : index
    %c0_2 = arith.constant 0 : index
    %1 = vector.load %arg2[%c0_1, %c0_2] : memref<32x16xf32, #tpu.memory_space<vmem>>, vector<32x16xf32>
    %c0_3 = arith.constant 0 : index
    %c0_4 = arith.constant 0 : index
    %2 = vector.load %arg3[%c0_3, %c0_4] : memref<1x16xf32, #tpu.memory_space<vmem>>, vector<1x16xf32>
    %cst = arith.constant dense<0.000000e+00> : vector<32x16xf32>
    %3 = tpu.matmul %0, %1, %cst {dimension_numbers = #tpu.dot_dimension_numbers<[1], [0], [0], [1], [0, 0, 1, 1], [], []>, precision = #tpu.contract_precision<fp32>} : vector<32x32xf32>, vector<32x16xf32>, vector<32x16xf32> -> vector<32x16xf32>
    %4 = vector.broadcast %2 : vector<1x16xf32> to vector<32x16xf32>
    %5 = arith.addf %3, %4 : vector<32x16xf32>
    %cst_5 = arith.constant dense<0xFF800000> : vector<32xf32>
    %6 = vector.multi_reduction <maximumf>, %5, %cst_5 [1] : vector<32x16xf32> to vector<32xf32>
    %7 = vector.shape_cast %6 : vector<32xf32> to vector<32x1xf32>
    %8 = vector.broadcast %7 : vector<32x1xf32> to vector<32x16xf32>
    %9 = arith.subf %5, %8 : vector<32x16xf32>
    %10 = math.exp %9 : vector<32x16xf32>
    %cst_6 = arith.constant dense<0.000000e+00> : vector<32xf32>
    %11 = vector.multi_reduction <add>, %10, %cst_6 [1] : vector<32x16xf32> to vector<32xf32>
    %12 = vector.shape_cast %11 : vector<32xf32> to vector<32x1xf32>
    %13 = vector.broadcast %12 : vector<32x1xf32> to vector<32x16xf32>
    %14 = arith.divf %10, %13 : vector<32x16xf32>
    %c0_7 = arith.constant 0 : index
    %c0_8 = arith.constant 0 : index
    %15 = vector.load %arg4[%c0_7, %c0_8] : memref<32x16xf32, #tpu.memory_space<vmem>>, vector<32x16xf32>
    tpu.vector_store %arg4[%c0_7, %c0_8], %14 {strides = array<i32>} : memref<32x16xf32, #tpu.memory_space<vmem>>, vector<32x16xf32>,
    return
  }
  func.func @transform_0(%arg0: i32) -> (i32, i32) {
    %c0_i32 = arith.constant 0 : i32
    %c0_i32_0 = arith.constant 0 : i32
    return %arg0, %c0_i32 : i32, i32
  }
  func.func @transform_1(%arg0: i32) -> (i32, i32) {
    %c0_i32 = arith.constant 0 : i32
    %c0_i32_0 = arith.constant 0 : i32
    %c0_i32_1 = arith.constant 0 : i32
    return %c0_i32, %c0_i32_0 : i32, i32
  }
  func.func @transform_2(%arg0: i32) -> (i32, i32) {
    %c0_i32 = arith.constant 0 : i32
    %c0_i32_0 = arith.constant 0 : i32
    %c0_i32_1 = arith.constant 0 : i32
    return %c0_i32, %c0_i32_0 : i32, i32
  }
  func.func @transform_3(%arg0: i32) -> (i32, i32) {
    %c0_i32 = arith.constant 0 : i32
    %c0_i32_0 = arith.constant 0 : i32
    return %arg0, %c0_i32 : i32, i32
  }
}

</mosaic_0001>

<llo_original>
// kernel: cluster_layer.1
$region0: #{cluster_layer.1}
  #allocation0 [shape = 'u32[]', space=smem, size = 0x4, offset = 0x4, fixed_abs, tag = 'smem constant byte address 0x4 - core index']
  #allocation1 [shape = 'u32[144,128]{1,0:T(1,128)}', space=vmem, size = 0x12000, scoped, tag = 'internal scratch']
  %s0 = inlined_call_operand.vmem [shape: f32[64,32], index: 0, kind: input, shape index: {}]
  %s1 = inlined_call_operand.vmem [shape: f32[32,16], index: 1, kind: input, shape index: {}]
  %s2 = inlined_call_operand.vmem [shape: f32[1,16], index: 2, kind: input, shape index: {}]
  %s3 = inlined_call_operand.vmem [shape: f32[64,16], index: 3, kind: output, shape index: {}]
  %s4 = sld [smem:[#allocation0]]
  $region45: #{cluster_layer.1} parent=0
    _
  %s6 = ssub.s32 1, %s4
  %s7 = scalar_select 0, %s6, %s4
  loop: start=0, step=1, limit=4
  $region2: #{cluster_layer.1} parent=0 // loop_pre_header
    _
  $region3: #{cluster_layer.1} parent=0 // loop_header
    %s9 = sphi 0, %s13
    %p10 = scmp.ge.s32.totalorder %s9, 4
    %s19 = sphi 0, %s21
    %s22 = sphi 0, %s19
    %s23 = sphi 0, %s22
    %s39 = sphi 0, %s23
    %s43 = sphi 0, %s43
    %s45 = sphi 0, %s43
    %s46 = sphi 0, %s45
    %s60 = sphi 0, %s46
    %s64 = sphi 0, %s64
    %s66 = sphi 0, %s64
    %s67 = sphi 0, %s66
    %s81 = sphi 0, %s67
    %s87 = sphi 0, %s89
    %s90 = sphi 0, %s87
    %s91 = sphi 0, %s90
    %s107 = sphi 0, %s91
  $region4: #{cluster_layer.1} parent=0 // loop_header_branch
    %12 = sbr.rel (%p10) target = $region8
  $region5: #{cluster_layer.1} parent=0 // loop_body
    %s14 = ssub.s32 %s9, 1
    %s15 = ssub.s32 %s9, 2
    %s16 = sadd.s32 %s9, 1
    %s17 = ssub.s32 %s9, %s16
    %p18 = scmp.eq.s32.totalorder %s17, 0
    %s20 = sadd.s32 %s19, 1
    %s21 = scalar_select %p18, %s19, %s20
    %p24 = pneg %p18
    %p25 = scmp.eq.s32.totalorder %s9, 1
    %p26 = por %p24, %p25
    %p27 = scmp.ne.s32.totalorder %s19, %s22
    %p28 = scmp.eq.s32.totalorder %s9, 0
    %p29 = por %p27, %p28
    %p30 = scmp.ne.s32.totalorder %s19, %s22
    %p31 = scmp.eq.s32.totalorder %s14, 1
    %p32 = por %p30, %p31
    %p33 = scmp.ne.s32.totalorder %s22, %s23
    %p34 = scmp.eq.s32.totalorder %s14, 0
    %p35 = por %p33, %p34
    %p36 = scmp.ne.s32.totalorder %s22, %s23
    %p37 = scmp.eq.s32.totalorder %s15, 1
    %p38 = por %p36, %p37
    %p40 = scmp.ne.s32.totalorder %s23, %s39
    %p41 = scmp.eq.s32.totalorder %s15, 0
    %p42 = por %p40, %p41
    %s44 = sadd.s32 %s43, 1
    %p47 = scmp.eq.s32.totalorder %s9, 1
    %p48 = scmp.ne.s32.totalorder %s43, %s45
    %p49 = scmp.eq.s32.totalorder %s9, 0
    %p50 = por %p48, %p49
    %p51 = scmp.ne.s32.totalorder %s43, %s45
    %p52 = scmp.eq.s32.totalorder %s14, 1
    %p53 = por %p51, %p52
    %p54 = scmp.ne.s32.totalorder %s45, %s46
    %p55 = scmp.eq.s32.totalorder %s14, 0
    %p56 = por %p54, %p55
    %p57 = scmp.ne.s32.totalorder %s45, %s46
    %p58 = scmp.eq.s32.totalorder %s15, 1
    %p59 = por %p57, %p58
    %p61 = scmp.ne.s32.totalorder %s46, %s60
    %p62 = scmp.eq.s32.totalorder %s15, 0
    %p63 = por %p61, %p62
    %s65 = sadd.s32 %s64, 1
    %p68 = scmp.eq.s32.totalorder %s9, 1
    %p69 = scmp.ne.s32.totalorder %s64, %s66
    %p70 = scmp.eq.s32.totalorder %s9, 0
    %p71 = por %p69, %p70
    %p72 = scmp.ne.s32.totalorder %s64, %s66
    %p73 = scmp.eq.s32.totalorder %s14, 1
    %p74 = por %p72, %p73
    %p75 = scmp.ne.s32.totalorder %s66, %s67
    %p76 = scmp.eq.s32.totalorder %s14, 0
    %p77 = por %p75, %p76
    %p78 = scmp.ne.s32.totalorder %s66, %s67
    %p79 = scmp.eq.s32.totalorder %s15, 1
    %p80 = por %p78, %p79
    %p82 = scmp.ne.s32.totalorder %s67, %s81
    %p83 = scmp.eq.s32.totalorder %s15, 0
    %p84 = por %p82, %p83
    %s85 = ssub.s32 %s9, %s16
    %p86 = scmp.eq.s32.totalorder %s85, 0
    %s88 = sadd.s32 %s87, 1
    %s89 = scalar_select %p86, %s87, %s88
    %p92 = pneg %p86
    %p93 = scmp.eq.s32.totalorder %s9, 1
    %p94 = por %p92, %p93
    %p95 = scmp.ne.s32.totalorder %s87, %s90
    %p96 = scmp.eq.s32.totalorder %s9, 0
    %p97 = por %p95, %p96
    %p98 = scmp.ne.s32.totalorder %s87, %s90
    %p99 = scmp.eq.s32.totalorder %s14, 1
    %p100 = por %p98, %p99
    %p101 = scmp.ne.s32.totalorder %s90, %s91
    %p102 = scmp.eq.s32.totalorder %s14, 0
    %p103 = por %p101, %p102
    %p104 = scmp.ne.s32.totalorder %s90, %s91
    %p105 = scmp.eq.s32.totalorder %s15, 1
    %p106 = por %p104, %p105
    %p108 = scmp.ne.s32.totalorder %s91, %s107
    %p109 = scmp.eq.s32.totalorder %s15, 0
    %p110 = por %p108, %p109
    %p111 = scmp.le.s32.totalorder 1, %s9
    %p112 = scmp.lt.s32.totalorder %s9, 3
    %p113 = pnand %p111, %p112
    %p114 = pneg %p113
    // Predicated region
    $region9: #{cluster_layer.1} parent=5 // pred_check
      _
    $region10: #{cluster_layer.1} parent=5 // pred_check_branch
      %116 = sbr.rel (%p113) target = $region12
    $region11: #{cluster_layer.1} parent=5 // pred_region
      %s117 = ssub.s32 %s9, 1
      // Predicated region
      $region13: #{cluster_layer.1} parent=11 // pred_check
        %p118 = pneg %p56
      $region14: #{cluster_layer.1} parent=11 // pred_check_branch
        %120 = sbr.rel (%p118) target = $region16
      $region15: #{cluster_layer.1} parent=11 // pred_region
        _
      $region16: #{cluster_layer.1} parent=11 // pred_fallthru
        _
      // Predicated region
      $region17: #{cluster_layer.1} parent=11 // pred_check
        %p121 = pneg %p77
      $region18: #{cluster_layer.1} parent=11 // pred_check_branch
        %123 = sbr.rel (%p121) target = $region20
      $region19: #{cluster_layer.1} parent=11 // pred_region
        _
      $region20: #{cluster_layer.1} parent=11 // pred_fallthru
        _
    $region12: #{cluster_layer.1} parent=5 // pred_fallthru
      _
    %p124 = scmp.lt.s32.totalorder %s9, 2
    // Predicated region
    $region21: #{cluster_layer.1} parent=5 // pred_check
      %p125 = pneg %p124
    $region22: #{cluster_layer.1} parent=5 // pred_check_branch
      %127 = sbr.rel (%p125) target = $region24
    $region23: #{cluster_layer.1} parent=5 // pred_region
      // Predicated region
      $region25: #{cluster_layer.1} parent=23 // pred_check
        %p128 = pneg %p29
      $region26: #{cluster_layer.1} parent=23 // pred_check_branch
        %130 = sbr.rel (%p128) target = $region28
      $region27: #{cluster_layer.1} parent=23 // pred_region
        %s131 = smul.u32 4, %s9
        %p132 = scmp.lt.s32.totalorder %s131, 7
        %s133 = scalar_select %p132, %s131, 7
        %s134 = smul.addr %s133, 8
        %s135 = scalar_lea.vmem %s0, %s134
        %s136 = smul.u32 4, %s9
      $region28: #{cluster_layer.1} parent=23 // pred_fallthru
        _
    $region24: #{cluster_layer.1} parent=5 // pred_fallthru
      _
    %p137 = scmp.le.s32.totalorder 1, %s9
    %p138 = scmp.lt.s32.totalorder %s9, 3
    %p139 = pnand %p137, %p138
    %p140 = pneg %p139
    // Predicated region
    $region29: #{cluster_layer.1} parent=5 // pred_check
      _
    $region30: #{cluster_layer.1} parent=5 // pred_check_branch
      %142 = sbr.rel (%p139) target = $region32
    $region31: #{cluster_layer.1} parent=5 // pred_region
      %s143 = ssub.s32 %s9, 1
      %s144 = smul.u32 4, %s14
      %p145 = scmp.lt.s32.totalorder %s144, 7
      %s146 = scalar_select %p145, %s144, 7
      %s147 = smul.addr %s146, 8
      %s148 = scalar_lea.vmem %s0, %s147
      %p149 = pneg %p35
      %p150 = pneg %p32
      %p151 = pneg %p56
      %p152 = pneg %p53
      %p153 = pneg %p77
      %p154 = pneg %p74
      %p155 = pneg %p103
      %p156 = pneg %p100
      %s157 = smul.u32 4, %s14
      %p158 = scmp.lt.s32.totalorder %s157, 7
      %s159 = scalar_select %p158, %s157, 7
      %s160 = smul.addr %s159, 8
      %s161 = scalar_lea.vmem %s3, %s160
      %s162 = smul.u32 4, %s14
      %p163 = scmp.lt.s32.totalorder %s162, 7
      %s164 = scalar_select %p163, %s162, 7
      %s165 = smul.addr %s164, 8
      %s166 = scalar_lea.vmem %s0, %s165
      %s167 = smul.u32 4, %s14
      %s168 = smul.u32 4, %s14
      %p169 = scmp.lt.s32.totalorder %s168, 7
      %s170 = scalar_select %p169, %s168, 7
      %s171 = smul.addr %s170, 8
      %s172 = scalar_lea.vmem %s3, %s171
      %s173 = smul.u32 4, %s14
      %v174 = vld [vmem:[%s166] sm:$0xff]
      %v175 = vld [vmem:[%s166 + $0x8] sm:$0xff]
      %v176 = vld [vmem:[%s166 + $0x10] sm:$0xff]
      %v177 = vld [vmem:[%s166 + $0x18] sm:$0xff]
      %v178 = vld [vmem:[%s1] sm:$0xff]
      %v179 = vld [vmem:[%s1 + $0x8] sm:$0xff]
      %v180 = vld [vmem:[%s1 + $0x10] sm:$0xff]
      %v181 = vld [vmem:[%s1 + $0x18] sm:$0xff]
      %v182 = vld [vmem:[%s2] sm:$0x1]
      %v184 = vlaneseq
      %v185 = vshrl.u32 %v184, 7
      %v186 = vsub.s32 0, %v185
      %v187 = vrot.slane %v182, %v186
      %vm189 = vcmask 261120
      %v191 = vsel %vm189, %v174, 0
      %v194 = vsel %vm189, %v175, 0
      %v197 = vsel %vm189, %v176, 0
      %v200 = vsel %vm189, %v177, 0
      %202 = vmatprep.subr.mxu0 0.0
      %203 = vmatpush1.msra.mxu0 0.0
      %204 = vmatprep.subr.mxu0 0.0
      %205 = vmatpush1.msra.mxu0 0.0
      %206 = vmatprep.subr.mxu0 0.0
      %207 = vmatpush1.msra.mxu0 0.0
      %208 = vmatprep.subr.mxu0 0.0
      %209 = vmatpush1.msra.mxu0 0.0
      %210 = vmatprep.subr.mxu0 0.0
      %211 = vmatpush1.msra.mxu0 0.0
      %212 = vmatprep.subr.mxu0 0.0
      %213 = vmatpush1.msra.mxu0 0.0
      %214 = vmatprep.subr.mxu0 0.0
      %215 = vmatpush1.msra.mxu0 0.0
      %216 = vmatprep.subr.mxu0 0.0
      %217 = vmatpush1.msra.mxu0 0.0
      %218 = vmatprep.subr.mxu0 0.0
      %219 = vmatpush1.msra.mxu0 0.0
      %220 = vmatprep.subr.mxu0 0.0
      %221 = vmatpush1.msra.mxu0 0.0
      %222 = vmatprep.subr.mxu0 0.0
      %223 = vmatpush1.msra.mxu0 0.0
      %224 = vmatprep.subr.mxu0 0.0
      %225 = vmatpush1.msra.mxu0 0.0
      %226 = vmatprep.subr.mxu0 0.0
      %v227 = vand.u32 %v181, 4294901760
      %228 = vmatpush1.msra.mxu0 %v227
      %229 = vmatprep.subr.mxu0 0.0
      %v230 = vand.u32 %v180, 4294901760
      %231 = vmatpush1.msra.mxu0 %v230
      %232 = vmatprep.subr.mxu0 0.0
      %v233 = vand.u32 %v179, 4294901760
      %234 = vmatpush1.msra.mxu0 %v233
      %235 = vmatprep.subr.mxu0 0.0
      %v236 = vand.u32 %v178, 4294901760
      %237 = vmatpush1.msra.mxu0 %v236
      %238 = vmatprep.subr.mxu0 0.0
      %239 = vmatpush2.msra.mxu0 0.0
      %240 = vmatprep.subr.mxu0 0.0
      %241 = vmatpush2.msra.mxu0 0.0
      %242 = vmatprep.subr.mxu0 0.0
      %243 = vmatpush2.msra.mxu0 0.0
      %244 = vmatprep.subr.mxu0 0.0
      %245 = vmatpush2.msra.mxu0 0.0
      %246 = vmatprep.subr.mxu0 0.0
      %247 = vmatpush2.msra.mxu0 0.0
      %248 = vmatprep.subr.mxu0 0.0
      %249 = vmatpush2.msra.mxu0 0.0
      %250 = vmatprep.subr.mxu0 0.0
      %251 = vmatpush2.msra.mxu0 0.0
      %252 = vmatprep.subr.mxu0 0.0
      %253 = vmatpush2.msra.mxu0 0.0
      %254 = vmatprep.subr.mxu0 0.0
      %255 = vmatpush2.msra.mxu0 0.0
      %256 = vmatprep.subr.mxu0 0.0
      %257 = vmatpush2.msra.mxu0 0.0
      %258 = vmatprep.subr.mxu0 0.0
      %259 = vmatpush2.msra.mxu0 0.0
      %260 = vmatprep.subr.mxu0 0.0
      %261 = vmatpush2.msra.mxu0 0.0
      %262 = vmatprep.subr.mxu0 0.0
      %263 = vmatpush2.msra.mxu0 0.0
      %264 = vmatprep.subr.mxu0 0.0
      %265 = vmatpush2.msra.mxu0 0.0
      %266 = vmatprep.subr.mxu0 0.0
      %267 = vmatpush2.msra.mxu0 0.0
      %268 = vmatprep.subr.mxu0 0.0
      %269 = vmatpush2.msra.mxu0 0.0
      %270 = vmatprep.mubr.f32.mxu0 0.0
      %v271 = vand.u32 %v191, 4294901760
      %v272 = vsub.f32 %v191, %v271
      %v273 = vand.u32 %v272, 4294901760
      %v274 = vsub.f32 %v272, %v273
      %v275 = vand.u32 %v274, 4294901760
      %276 = vmatmul.mubr.f32.gmra.mxu0 %v275
      %v277 = vpop.f32.mrf.mxu0
      %v278 = vadd.f32 %v187, %v277
      %v279 = vpop.f32.mrf.mxu0
      %280 = vmatprep.mubr.f32.mxu0 0.0
      %v281 = vand.u32 %v194, 4294901760
      %v282 = vsub.f32 %v194, %v281
      %v283 = vand.u32 %v282, 4294901760
      %v284 = vsub.f32 %v282, %v283
      %v285 = vand.u32 %v284, 4294901760
      %286 = vmatmul.mubr.f32.gmra.mxu0 %v285
      %v287 = vpop.f32.mrf.mxu0
      %v288 = vadd.f32 %v187, %v287
      %v289 = vpop.f32.mrf.mxu0
      %290 = vmatprep.mubr.f32.mxu0 0.0
      %v291 = vand.u32 %v197, 4294901760
      %v292 = vsub.f32 %v197, %v291
      %v293 = vand.u32 %v292, 4294901760
      %v294 = vsub.f32 %v292, %v293
      %v295 = vand.u32 %v294, 4294901760
      %296 = vmatmul.mubr.f32.gmra.mxu0 %v295
      %v297 = vpop.f32.mrf.mxu0
      %v298 = vadd.f32 %v187, %v297
      %v299 = vpop.f32.mrf.mxu0
      %300 = vmatprep.mubr.f32.mxu0 0.0
      %v301 = vand.u32 %v200, 4294901760
      %v302 = vsub.f32 %v200, %v301
      %v303 = vand.u32 %v302, 4294901760
      %v304 = vsub.f32 %v302, %v303
      %v305 = vand.u32 %v304, 4294901760
      %306 = vmatmul.mubr.f32.gmra.mxu0 %v305
      %v307 = vpop.f32.mrf.mxu0
      %v308 = vadd.f32 %v187, %v307
      %v309 = vpop.f32.mrf.mxu0
      %310 = vdwg.mxu0
      %311 = vmatprep.subr.mxu0 0.0
      %312 = vmatpush1.msra.mxu0 0.0
      %313 = vmatprep.subr.mxu0 0.0
      %314 = vmatpush1.msra.mxu0 0.0
      %315 = vmatprep.subr.mxu0 0.0
      %316 = vmatpush1.msra.mxu0 0.0
      %317 = vmatprep.subr.mxu0 0.0
      %318 = vmatpush1.msra.mxu0 0.0
      %319 = vmatprep.subr.mxu0 0.0
      %320 = vmatpush1.msra.mxu0 0.0
      %321 = vmatprep.subr.mxu0 0.0
      %322 = vmatpush1.msra.mxu0 0.0
      %323 = vmatprep.subr.mxu0 0.0
      %324 = vmatpush1.msra.mxu0 0.0
      %325 = vmatprep.subr.mxu0 0.0
      %326 = vmatpush1.msra.mxu0 0.0
      %327 = vmatprep.subr.mxu0 0.0
      %328 = vmatpush1.msra.mxu0 0.0
      %329 = vmatprep.subr.mxu0 0.0
      %330 = vmatpush1.msra.mxu0 0.0
      %331 = vmatprep.subr.mxu0 0.0
      %332 = vmatpush1.msra.mxu0 0.0
      %333 = vmatprep.subr.mxu0 0.0
      %334 = vmatpush1.msra.mxu0 0.0
      %335 = vmatprep.subr.mxu0 0.0
      %v336 = vand.u32 %v181, 4294901760
      %v337 = vsub.f32 %v181, %v336
      %v338 = vand.u32 %v337, 4294901760
      %v339 = vsub.f32 %v337, %v338
      %v340 = vand.u32 %v339, 4294901760
      %341 = vmatpush1.msra.mxu0 %v340
      %342 = vmatprep.subr.mxu0 0.0
      %v343 = vand.u32 %v180, 4294901760
      %v344 = vsub.f32 %v180, %v343
      %v345 = vand.u32 %v344, 4294901760
      %v346 = vsub.f32 %v344, %v345
      %v347 = vand.u32 %v346, 4294901760
      %348 = vmatpush1.msra.mxu0 %v347
      %349 = vmatprep.subr.mxu0 0.0
      %v350 = vand.u32 %v179, 4294901760
      %v351 = vsub.f32 %v179, %v350
      %v352 = vand.u32 %v351, 4294901760
      %v353 = vsub.f32 %v351, %v352
      %v354 = vand.u32 %v353, 4294901760
      %355 = vmatpush1.msra.mxu0 %v354
      %356 = vmatprep.subr.mxu0 0.0
      %v357 = vand.u32 %v178, 4294901760
      %v358 = vsub.f32 %v178, %v357
      %v359 = vand.u32 %v358, 4294901760
      %v360 = vsub.f32 %v358, %v359
      %v361 = vand.u32 %v360, 4294901760
      %362 = vmatpush1.msra.mxu0 %v361
      %363 = vmatprep.subr.mxu0 0.0
      %364 = vmatpush2.msra.mxu0 0.0
      %365 = vmatprep.subr.mxu0 0.0
      %366 = vmatpush2.msra.mxu0 0.0
      %367 = vmatprep.subr.mxu0 0.0
      %368 = vmatpush2.msra.mxu0 0.0
      %369 = vmatprep.subr.mxu0 0.0
      %370 = vmatpush2.msra.mxu0 0.0
      %371 = vmatprep.subr.mxu0 0.0
      %372 = vmatpush2.msra.mxu0 0.0
      %373 = vmatprep.subr.mxu0 0.0
      %374 = vmatpush2.msra.mxu0 0.0
      %375 = vmatprep.subr.mxu0 0.0
      %376 = vmatpush2.msra.mxu0 0.0
      %377 = vmatprep.subr.mxu0 0.0
      %378 = vmatpush2.msra.mxu0 0.0
      %379 = vmatprep.subr.mxu0 0.0
      %380 = vmatpush2.msra.mxu0 0.0
      %381 = vmatprep.subr.mxu0 0.0
      %382 = vmatpush2.msra.mxu0 0.0
      %383 = vmatprep.subr.mxu0 0.0
      %384 = vmatpush2.msra.mxu0 0.0
      %385 = vmatprep.subr.mxu0 0.0
      %386 = vmatpush2.msra.mxu0 0.0
      %387 = vmatprep.subr.mxu0 0.0
      %388 = vmatpush2.msra.mxu0 0.0
      %389 = vmatprep.subr.mxu0 0.0
      %390 = vmatpush2.msra.mxu0 0.0
      %391 = vmatprep.subr.mxu0 0.0
      %392 = vmatpush2.msra.mxu0 0.0
      %393 = vmatprep.subr.mxu0 0.0
      %394 = vmatpush2.msra.mxu0 0.0
      %395 = vmatprep.mubr.f32.mxu0 0.0
      %v396 = vand.u32 %v191, 4294901760
      %397 = vmatmul.mubr.f32.gmra.mxu0 %v396
      %v398 = vpop.f32.mrf.mxu0
      %v399 = vadd.f32 %v278, %v398
      %v400 = vpop.f32.mrf.mxu0
      %401 = vmatprep.mubr.f32.mxu0 0.0
      %v402 = vand.u32 %v194, 4294901760
      %403 = vmatmul.mubr.f32.gmra.mxu0 %v402
      %v404 = vpop.f32.mrf.mxu0
      %v405 = vadd.f32 %v288, %v404
      %v406 = vpop.f32.mrf.mxu0
      %407 = vmatprep.mubr.f32.mxu0 0.0
      %v408 = vand.u32 %v197, 4294901760
      %409 = vmatmul.mubr.f32.gmra.mxu0 %v408
      %v410 = vpop.f32.mrf.mxu0
      %v411 = vadd.f32 %v298, %v410
      %v412 = vpop.f32.mrf.mxu0
      %413 = vmatprep.mubr.f32.mxu0 0.0
      %v414 = vand.u32 %v200, 4294901760
      %415 = vmatmul.mubr.f32.gmra.mxu0 %v414
      %v416 = vpop.f32.mrf.mxu0
      %v417 = vadd.f32 %v308, %v416
      %v418 = vpop.f32.mrf.mxu0
      %419 = vdwg.mxu0
      %420 = vmatprep.subr.mxu0 0.0
      %421 = vmatpush1.msra.mxu0 0.0
      %422 = vmatprep.subr.mxu0 0.0
      %423 = vmatpush1.msra.mxu0 0.0
      %424 = vmatprep.subr.mxu0 0.0
      %425 = vmatpush1.msra.mxu0 0.0
      %426 = vmatprep.subr.mxu0 0.0
      %427 = vmatpush1.msra.mxu0 0.0
      %428 = vmatprep.subr.mxu0 0.0
      %429 = vmatpush1.msra.mxu0 0.0
      %430 = vmatprep.subr.mxu0 0.0
      %431 = vmatpush1.msra.mxu0 0.0
      %432 = vmatprep.subr.mxu0 0.0
      %433 = vmatpush1.msra.mxu0 0.0
      %434 = vmatprep.subr.mxu0 0.0
      %435 = vmatpush1.msra.mxu0 0.0
      %436 = vmatprep.subr.mxu0 0.0
      %437 = vmatpush1.msra.mxu0 0.0
      %438 = vmatprep.subr.mxu0 0.0
      %439 = vmatpush1.msra.mxu0 0.0
      %440 = vmatprep.subr.mxu0 0.0
      %441 = vmatpush1.msra.mxu0 0.0
      %442 = vmatprep.subr.mxu0 0.0
      %443 = vmatpush1.msra.mxu0 0.0
      %444 = vmatprep.subr.mxu0 0.0
      %v445 = vand.u32 %v181, 4294901760
      %v446 = vsub.f32 %v181, %v445
      %447 = vmatpush1.msra.mxu0 %v446
      %448 = vmatprep.subr.mxu0 0.0
      %v449 = vand.u32 %v180, 4294901760
      %v450 = vsub.f32 %v180, %v449
      %451 = vmatpush1.msra.mxu0 %v450
      %452 = vmatprep.subr.mxu0 0.0
      %v453 = vand.u32 %v179, 4294901760
      %v454 = vsub.f32 %v179, %v453
      %455 = vmatpush1.msra.mxu0 %v454
      %456 = vmatprep.subr.mxu0 0.0
      %v457 = vand.u32 %v178, 4294901760
      %v458 = vsub.f32 %v178, %v457
      %459 = vmatpush1.msra.mxu0 %v458
      %460 = vmatprep.subr.mxu0 0.0
      %461 = vmatpush2.msra.mxu0 0.0
      %462 = vmatprep.subr.mxu0 0.0
      %463 = vmatpush2.msra.mxu0 0.0
      %464 = vmatprep.subr.mxu0 0.0
      %465 = vmatpush2.msra.mxu0 0.0
      %466 = vmatprep.subr.mxu0 0.0
      %467 = vmatpush2.msra.mxu0 0.0
      %468 = vmatprep.subr.mxu0 0.0
      %469 = vmatpush2.msra.mxu0 0.0
      %470 = vmatprep.subr.mxu0 0.0
      %471 = vmatpush2.msra.mxu0 0.0
      %472 = vmatprep.subr.mxu0 0.0
      %473 = vmatpush2.msra.mxu0 0.0
      %474 = vmatprep.subr.mxu0 0.0
      %475 = vmatpush2.msra.mxu0 0.0
      %476 = vmatprep.subr.mxu0 0.0
      %477 = vmatpush2.msra.mxu0 0.0
      %478 = vmatprep.subr.mxu0 0.0
      %479 = vmatpush2.msra.mxu0 0.0
      %480 = vmatprep.subr.mxu0 0.0
      %481 = vmatpush2.msra.mxu0 0.0
      %482 = vmatprep.subr.mxu0 0.0
      %483 = vmatpush2.msra.mxu0 0.0
      %484 = vmatprep.subr.mxu0 0.0
      %485 = vmatpush2.msra.mxu0 0.0
      %486 = vmatprep.subr.mxu0 0.0
      %487 = vmatpush2.msra.mxu0 0.0
      %488 = vmatprep.subr.mxu0 0.0
      %489 = vmatpush2.msra.mxu0 0.0
      %490 = vmatprep.subr.mxu0 0.0
      %491 = vmatpush2.msra.mxu0 0.0
      %492 = vmatprep.mubr.f32.mxu0 0.0
      %v493 = vand.u32 %v191, 4294901760
      %v494 = vsub.f32 %v191, %v493
      %495 = vmatmul.mubr.f32.gmra.mxu0 %v494
      %v496 = vpop.f32.mrf.mxu0
      %v497 = vadd.f32 %v399, %v496
      %v498 = vpop.f32.mrf.mxu0
      %499 = vmatprep.mubr.f32.mxu0 0.0
      %v500 = vand.u32 %v194, 4294901760
      %v501 = vsub.f32 %v194, %v500
      %502 = vmatmul.mubr.f32.gmra.mxu0 %v501
      %v503 = vpop.f32.mrf.mxu0
      %v504 = vadd.f32 %v405, %v503
      %v505 = vpop.f32.mrf.mxu0
      %506 = vmatprep.mubr.f32.mxu0 0.0
      %v507 = vand.u32 %v197, 4294901760
      %v508 = vsub.f32 %v197, %v507
      %509 = vmatmul.mubr.f32.gmra.mxu0 %v508
      %v510 = vpop.f32.mrf.mxu0
      %v511 = vadd.f32 %v411, %v510
      %v512 = vpop.f32.mrf.mxu0
      %513 = vmatprep.mubr.f32.mxu0 0.0
      %v514 = vand.u32 %v200, 4294901760
      %v515 = vsub.f32 %v200, %v514
      %516 = vmatmul.mubr.f32.gmra.mxu0 %v515
      %v517 = vpop.f32.mrf.mxu0
      %v518 = vadd.f32 %v417, %v517
      %v519 = vpop.f32.mrf.mxu0
      %520 = vdwg.mxu0
      %521 = vmatprep.subr.mxu0 0.0
      %522 = vmatpush1.msra.mxu0 0.0
      %523 = vmatprep.subr.mxu0 0.0
      %524 = vmatpush1.msra.mxu0 0.0
      %525 = vmatprep.subr.mxu0 0.0
      %526 = vmatpush1.msra.mxu0 0.0
      %527 = vmatprep.subr.mxu0 0.0
      %528 = vmatpush1.msra.mxu0 0.0
      %529 = vmatprep.subr.mxu0 0.0
      %530 = vmatpush1.msra.mxu0 0.0
      %531 = vmatprep.subr.mxu0 0.0
      %532 = vmatpush1.msra.mxu0 0.0
      %533 = vmatprep.subr.mxu0 0.0
      %534 = vmatpush1.msra.mxu0 0.0
      %535 = vmatprep.subr.mxu0 0.0
      %536 = vmatpush1.msra.mxu0 0.0
      %537 = vmatprep.subr.mxu0 0.0
      %538 = vmatpush1.msra.mxu0 0.0
      %539 = vmatprep.subr.mxu0 0.0
      %540 = vmatpush1.msra.mxu0 0.0
      %541 = vmatprep.subr.mxu0 0.0
      %542 = vmatpush1.msra.mxu0 0.0
      %543 = vmatprep.subr.mxu0 0.0
      %544 = vmatpush1.msra.mxu0 0.0
      %545 = vmatprep.subr.mxu0 0.0
      %v546 = vand.u32 %v181, 4294901760
      %547 = vmatpush1.msra.mxu0 %v546
      %548 = vmatprep.subr.mxu0 0.0
      %v549 = vand.u32 %v180, 4294901760
      %550 = vmatpush1.msra.mxu0 %v549
      %551 = vmatprep.subr.mxu0 0.0
      %v552 = vand.u32 %v179, 4294901760
      %553 = vmatpush1.msra.mxu0 %v552
      %554 = vmatprep.subr.mxu0 0.0
      %v555 = vand.u32 %v178, 4294901760
      %556 = vmatpush1.msra.mxu0 %v555
      %557 = vmatprep.subr.mxu0 0.0
      %558 = vmatpush2.msra.mxu0 0.0
      %559 = vmatprep.subr.mxu0 0.0
      %560 = vmatpush2.msra.mxu0 0.0
      %561 = vmatprep.subr.mxu0 0.0
      %562 = vmatpush2.msra.mxu0 0.0
      %563 = vmatprep.subr.mxu0 0.0
      %564 = vmatpush2.msra.mxu0 0.0
      %565 = vmatprep.subr.mxu0 0.0
      %566 = vmatpush2.msra.mxu0 0.0
      %567 = vmatprep.subr.mxu0 0.0
      %568 = vmatpush2.msra.mxu0 0.0
      %569 = vmatprep.subr.mxu0 0.0
      %570 = vmatpush2.msra.mxu0 0.0
      %571 = vmatprep.subr.mxu0 0.0
      %572 = vmatpush2.msra.mxu0 0.0
      %573 = vmatprep.subr.mxu0 0.0
      %574 = vmatpush2.msra.mxu0 0.0
      %575 = vmatprep.subr.mxu0 0.0
      %576 = vmatpush2.msra.mxu0 0.0
      %577 = vmatprep.subr.mxu0 0.0
      %578 = vmatpush2.msra.mxu0 0.0
      %579 = vmatprep.subr.mxu0 0.0
      %580 = vmatpush2.msra.mxu0 0.0
      %581 = vmatprep.subr.mxu0 0.0
      %582 = vmatpush2.msra.mxu0 0.0
      %583 = vmatprep.subr.mxu0 0.0
      %584 = vmatpush2.msra.mxu0 0.0
      %585 = vmatprep.subr.mxu0 0.0
      %586 = vmatpush2.msra.mxu0 0.0
      %587 = vmatprep.subr.mxu0 0.0
      %588 = vmatpush2.msra.mxu0 0.0
      %589 = vmatprep.mubr.f32.mxu0 0.0
      %v590 = vand.u32 %v191, 4294901760
      %v591 = vsub.f32 %v191, %v590
      %v592 = vand.u32 %v591, 4294901760
      %593 = vmatmul.mubr.f32.gmra.mxu0 %v592
      %v594 = vpop.f32.mrf.mxu0
      %v595 = vadd.f32 %v497, %v594
      %v596 = vpop.f32.mrf.mxu0
      %597 = vmatprep.mubr.f32.mxu0 0.0
      %v598 = vand.u32 %v194, 4294901760
      %v599 = vsub.f32 %v194, %v598
      %v600 = vand.u32 %v599, 4294901760
      %601 = vmatmul.mubr.f32.gmra.mxu0 %v600
      %v602 = vpop.f32.mrf.mxu0
      %v603 = vadd.f32 %v504, %v602
      %v604 = vpop.f32.mrf.mxu0
      %605 = vmatprep.mubr.f32.mxu0 0.0
      %v606 = vand.u32 %v197, 4294901760
      %v607 = vsub.f32 %v197, %v606
      %v608 = vand.u32 %v607, 4294901760
      %609 = vmatmul.mubr.f32.gmra.mxu0 %v608
      %v610 = vpop.f32.mrf.mxu0
      %v611 = vadd.f32 %v511, %v610
      %v612 = vpop.f32.mrf.mxu0
      %613 = vmatprep.mubr.f32.mxu0 0.0
      %v614 = vand.u32 %v200, 4294901760
      %v615 = vsub.f32 %v200, %v614
      %v616 = vand.u32 %v615, 4294901760
      %617 = vmatmul.mubr.f32.gmra.mxu0 %v616
      %v618 = vpop.f32.mrf.mxu0
      %v619 = vadd.f32 %v518, %v618
      %v620 = vpop.f32.mrf.mxu0
      %621 = vdwg.mxu0
      %622 = vmatprep.subr.mxu0 0.0
      %623 = vmatpush1.msra.mxu0 0.0
      %624 = vmatprep.subr.mxu0 0.0
      %625 = vmatpush1.msra.mxu0 0.0
      %626 = vmatprep.subr.mxu0 0.0
      %627 = vmatpush1.msra.mxu0 0.0
      %628 = vmatprep.subr.mxu0 0.0
      %629 = vmatpush1.msra.mxu0 0.0
      %630 = vmatprep.subr.mxu0 0.0
      %631 = vmatpush1.msra.mxu0 0.0
      %632 = vmatprep.subr.mxu0 0.0
      %633 = vmatpush1.msra.mxu0 0.0
      %634 = vmatprep.subr.mxu0 0.0
      %635 = vmatpush1.msra.mxu0 0.0
      %636 = vmatprep.subr.mxu0 0.0
      %637 = vmatpush1.msra.mxu0 0.0
      %638 = vmatprep.subr.mxu0 0.0
      %639 = vmatpush1.msra.mxu0 0.0
      %640 = vmatprep.subr.mxu0 0.0
      %641 = vmatpush1.msra.mxu0 0.0
      %642 = vmatprep.subr.mxu0 0.0
      %643 = vmatpush1.msra.mxu0 0.0
      %644 = vmatprep.subr.mxu0 0.0
      %645 = vmatpush1.msra.mxu0 0.0
      %646 = vmatprep.subr.mxu0 0.0
      %v647 = vand.u32 %v181, 4294901760
      %v648 = vsub.f32 %v181, %v647
      %v649 = vand.u32 %v648, 4294901760
      %650 = vmatpush1.msra.mxu0 %v649
      %651 = vmatprep.subr.mxu0 0.0
      %v652 = vand.u32 %v180, 4294901760
      %v653 = vsub.f32 %v180, %v652
      %v654 = vand.u32 %v653, 4294901760
      %655 = vmatpush1.msra.mxu0 %v654
      %656 = vmatprep.subr.mxu0 0.0
      %v657 = vand.u32 %v179, 4294901760
      %v658 = vsub.f32 %v179, %v657
      %v659 = vand.u32 %v658, 4294901760
      %660 = vmatpush1.msra.mxu0 %v659
      %661 = vmatprep.subr.mxu0 0.0
      %v662 = vand.u32 %v178, 4294901760
      %v663 = vsub.f32 %v178, %v662
      %v664 = vand.u32 %v663, 4294901760
      %665 = vmatpush1.msra.mxu0 %v664
      %666 = vmatprep.subr.mxu0 0.0
      %667 = vmatpush2.msra.mxu0 0.0
      %668 = vmatprep.subr.mxu0 0.0
      %669 = vmatpush2.msra.mxu0 0.0
      %670 = vmatprep.subr.mxu0 0.0
      %671 = vmatpush2.msra.mxu0 0.0
      %672 = vmatprep.subr.mxu0 0.0
      %673 = vmatpush2.msra.mxu0 0.0
      %674 = vmatprep.subr.mxu0 0.0
      %675 = vmatpush2.msra.mxu0 0.0
      %676 = vmatprep.subr.mxu0 0.0
      %677 = vmatpush2.msra.mxu0 0.0
      %678 = vmatprep.subr.mxu0 0.0
      %679 = vmatpush2.msra.mxu0 0.0
      %680 = vmatprep.subr.mxu0 0.0
      %681 = vmatpush2.msra.mxu0 0.0
      %682 = vmatprep.subr.mxu0 0.0
      %683 = vmatpush2.msra.mxu0 0.0
      %684 = vmatprep.subr.mxu0 0.0
      %685 = vmatpush2.msra.mxu0 0.0
      %686 = vmatprep.subr.mxu0 0.0
      %687 = vmatpush2.msra.mxu0 0.0
      %688 = vmatprep.subr.mxu0 0.0
      %689 = vmatpush2.msra.mxu0 0.0
      %690 = vmatprep.subr.mxu0 0.0
      %691 = vmatpush2.msra.mxu0 0.0
      %692 = vmatprep.subr.mxu0 0.0
      %693 = vmatpush2.msra.mxu0 0.0
      %694 = vmatprep.subr.mxu0 0.0
      %695 = vmatpush2.msra.mxu0 0.0
      %696 = vmatprep.subr.mxu0 0.0
      %697 = vmatpush2.msra.mxu0 0.0
      %698 = vmatprep.mubr.f32.mxu0 0.0
      %v699 = vand.u32 %v191, 4294901760
      %700 = vmatmul.mubr.f32.gmra.mxu0 %v699
      %v701 = vpop.f32.mrf.mxu0
      %v702 = vadd.f32 %v595, %v701
      %v703 = vpop.f32.mrf.mxu0
      %704 = vmatprep.mubr.f32.mxu0 0.0
      %v705 = vand.u32 %v194, 4294901760
      %706 = vmatmul.mubr.f32.gmra.mxu0 %v705
      %v707 = vpop.f32.mrf.mxu0
      %v708 = vadd.f32 %v603, %v707
      %v709 = vpop.f32.mrf.mxu0
      %710 = vmatprep.mubr.f32.mxu0 0.0
      %v711 = vand.u32 %v197, 4294901760
      %712 = vmatmul.mubr.f32.gmra.mxu0 %v711
      %v713 = vpop.f32.mrf.mxu0
      %v714 = vadd.f32 %v611, %v713
      %v715 = vpop.f32.mrf.mxu0
      %716 = vmatprep.mubr.f32.mxu0 0.0
      %v717 = vand.u32 %v200, 4294901760
      %718 = vmatmul.mubr.f32.gmra.mxu0 %v717
      %v719 = vpop.f32.mrf.mxu0
      %v720 = vadd.f32 %v619, %v719
      %v721 = vpop.f32.mrf.mxu0
      %722 = vdwg.mxu0
      %723 = vmatprep.subr.mxu0 0.0
      %724 = vmatpush1.msra.mxu0 0.0
      %725 = vmatprep.subr.mxu0 0.0
      %726 = vmatpush1.msra.mxu0 0.0
      %727 = vmatprep.subr.mxu0 0.0
      %728 = vmatpush1.msra.mxu0 0.0
      %729 = vmatprep.subr.mxu0 0.0
      %730 = vmatpush1.msra.mxu0 0.0
      %731 = vmatprep.subr.mxu0 0.0
      %732 = vmatpush1.msra.mxu0 0.0
      %733 = vmatprep.subr.mxu0 0.0
      %734 = vmatpush1.msra.mxu0 0.0
      %735 = vmatprep.subr.mxu0 0.0
      %736 = vmatpush1.msra.mxu0 0.0
      %737 = vmatprep.subr.mxu0 0.0
      %738 = vmatpush1.msra.mxu0 0.0
      %739 = vmatprep.subr.mxu0 0.0
      %740 = vmatpush1.msra.mxu0 0.0
      %741 = vmatprep.subr.mxu0 0.0
      %742 = vmatpush1.msra.mxu0 0.0
      %743 = vmatprep.subr.mxu0 0.0
      %744 = vmatpush1.msra.mxu0 0.0
      %745 = vmatprep.subr.mxu0 0.0
      %746 = vmatpush1.msra.mxu0 0.0
      %747 = vmatprep.subr.mxu0 0.0
      %v748 = vand.u32 %v181, 4294901760
      %749 = vmatpush1.msra.mxu0 %v748
      %750 = vmatprep.subr.mxu0 0.0
      %v751 = vand.u32 %v180, 4294901760
      %752 = vmatpush1.msra.mxu0 %v751
      %753 = vmatprep.subr.mxu0 0.0
      %v754 = vand.u32 %v179, 4294901760
      %755 = vmatpush1.msra.mxu0 %v754
      %756 = vmatprep.subr.mxu0 0.0
      %v757 = vand.u32 %v178, 4294901760
      %758 = vmatpush1.msra.mxu0 %v757
      %759 = vmatprep.subr.mxu0 0.0
      %760 = vmatpush2.msra.mxu0 0.0
      %761 = vmatprep.subr.mxu0 0.0
      %762 = vmatpush2.msra.mxu0 0.0
      %763 = vmatprep.subr.mxu0 0.0
      %764 = vmatpush2.msra.mxu0 0.0
      %765 = vmatprep.subr.mxu0 0.0
      %766 = vmatpush2.msra.mxu0 0.0
      %767 = vmatprep.subr.mxu0 0.0
      %768 = vmatpush2.msra.mxu0 0.0
      %769 = vmatprep.subr.mxu0 0.0
      %770 = vmatpush2.msra.mxu0 0.0
      %771 = vmatprep.subr.mxu0 0.0
      %772 = vmatpush2.msra.mxu0 0.0
      %773 = vmatprep.subr.mxu0 0.0
      %774 = vmatpush2.msra.mxu0 0.0
      %775 = vmatprep.subr.mxu0 0.0
      %776 = vmatpush2.msra.mxu0 0.0
      %777 = vmatprep.subr.mxu0 0.0
      %778 = vmatpush2.msra.mxu0 0.0
      %779 = vmatprep.subr.mxu0 0.0
      %780 = vmatpush2.msra.mxu0 0.0
      %781 = vmatprep.subr.mxu0 0.0
      %782 = vmatpush2.msra.mxu0 0.0
      %783 = vmatprep.subr.mxu0 0.0
      %784 = vmatpush2.msra.mxu0 0.0
      %785 = vmatprep.subr.mxu0 0.0
      %786 = vmatpush2.msra.mxu0 0.0
      %787 = vmatprep.subr.mxu0 0.0
      %788 = vmatpush2.msra.mxu0 0.0
      %789 = vmatprep.subr.mxu0 0.0
      %790 = vmatpush2.msra.mxu0 0.0
      %791 = vmatprep.mubr.f32.mxu0 0.0
      %v792 = vand.u32 %v191, 4294901760
      %793 = vmatmul.mubr.f32.gmra.mxu0 %v792
      %v794 = vpop.f32.mrf.mxu0
      %v795 = vadd.f32 %v702, %v794
      %v796 = vpop.f32.mrf.mxu0
      %797 = vmatprep.mubr.f32.mxu0 0.0
      %v798 = vand.u32 %v194, 4294901760
      %799 = vmatmul.mubr.f32.gmra.mxu0 %v798
      %v800 = vpop.f32.mrf.mxu0
      %v801 = vadd.f32 %v708, %v800
      %v802 = vpop.f32.mrf.mxu0
      %803 = vmatprep.mubr.f32.mxu0 0.0
      %v804 = vand.u32 %v197, 4294901760
      %805 = vmatmul.mubr.f32.gmra.mxu0 %v804
      %v806 = vpop.f32.mrf.mxu0
      %v807 = vadd.f32 %v714, %v806
      %v808 = vpop.f32.mrf.mxu0
      %809 = vmatprep.mubr.f32.mxu0 0.0
      %v810 = vand.u32 %v200, 4294901760
      %811 = vmatmul.mubr.f32.gmra.mxu0 %v810
      %v812 = vpop.f32.mrf.mxu0
      %v813 = vadd.f32 %v720, %v812
      %v814 = vpop.f32.mrf.mxu0
      %815 = vdwg.mxu0
      %vm816 = vcmask 130048
      %v817 = vsel %vm816, %v795, -inf
      %818 = vmax.xlane.f32.xlu0 %v817
      %v819 = vpop.xlane.xlu0 %818
      %v820 = vsel %vm816, %v801, -inf
      %821 = vmax.xlane.f32.xlu0 %v820
      %v822 = vpop.xlane.xlu0 %821
      %v823 = vsel %vm816, %v807, -inf
      %824 = vmax.xlane.f32.xlu0 %v823
      %v825 = vpop.xlane.xlu0 %824
      %v826 = vsel %vm816, %v813, -inf
      %827 = vmax.xlane.f32.xlu0 %v826
      %v828 = vpop.xlane.xlu0 %827
      %v829 = vsub.f32 %v795, %v819
      %v830 = vsub.f32 %v801, %v822
      %v831 = vsub.f32 %v807, %v825
      %v832 = vsub.f32 %v813, %v828
      %v833 = vmul.f32 %v829, 1.442695
      %v834 = vpow.pop %v833
      %v835 = vmul.f32 %v830, 1.442695
      %v836 = vpow.pop %v835
      %v837 = vmul.f32 %v831, 1.442695
      %v838 = vpow.pop %v837
      %v839 = vmul.f32 %v832, 1.442695
      %v840 = vpow.pop %v839
      %v841 = vsel %vm816, %v834, 0.0
      %842 = vadd.xlane.f32.xlu0 %v841
      %v843 = vpop.xlane.xlu0 %842
      %v844 = vsel %vm816, %v836, 0.0
      %845 = vadd.xlane.f32.xlu0 %v844
      %v846 = vpop.xlane.xlu0 %845
      %v847 = vsel %vm816, %v838, 0.0
      %848 = vadd.xlane.f32.xlu0 %v847
      %v849 = vpop.xlane.xlu0 %848
      %v850 = vsel %vm816, %v840, 0.0
      %851 = vadd.xlane.f32.xlu0 %v850
      %v852 = vpop.xlane.xlu0 %851
      %v853 = vrcp.pop %v843
      %v854 = vmul.f32 %v834, %v853
      %v855 = vrcp.pop %v846
      %v856 = vmul.f32 %v836, %v855
      %v857 = vrcp.pop %v849
      %v858 = vmul.f32 %v838, %v857
      %v859 = vrcp.pop %v852
      %v860 = vmul.f32 %v840, %v859
      %861 = vst.msk [vmem:[%s172] sm:$0xff] %vm816, %v854
      %862 = vst.msk [vmem:[%s172 + $0x8] sm:$0xff] %vm816, %v856
      %863 = vst.msk [vmem:[%s172 + $0x10] sm:$0xff] %vm816, %v858
      %864 = vst.msk [vmem:[%s172 + $0x18] sm:$0xff] %vm816, %v860
      %s865 = smul.u32 4, %s14
      %p866 = scmp.lt.s32.totalorder %s865, 7
      %s867 = scalar_select %p866, %s865, 7
      %s868 = smul.addr %s867, 8
      %s869 = scalar_lea.vmem %s3, %s868
      // Predicated region
      $region33: #{cluster_layer.1} parent=31 // pred_check
        %p870 = pneg %p100
      $region34: #{cluster_layer.1} parent=31 // pred_check_branch
        %872 = sbr.rel (%p870) target = $region36
      $region35: #{cluster_layer.1} parent=31 // pred_region
        %s873 = smul.u32 4, %s14
      $region36: #{cluster_layer.1} parent=31 // pred_fallthru
        _
    $region32: #{cluster_layer.1} parent=5 // pred_fallthru
      _
    %p874 = scmp.le.s32.totalorder 2, %s9
    // Predicated region
    $region37: #{cluster_layer.1} parent=5 // pred_check
      %p875 = pneg %p874
    $region38: #{cluster_layer.1} parent=5 // pred_check_branch
      %877 = sbr.rel (%p875) target = $region40
    $region39: #{cluster_layer.1} parent=5 // pred_region
      %s878 = ssub.s32 %s9, 2
      // Predicated region
      $region41: #{cluster_layer.1} parent=39 // pred_check
        %p879 = pneg %p106
      $region42: #{cluster_layer.1} parent=39 // pred_check_branch
        %881 = sbr.rel (%p879) target = $region44
      $region43: #{cluster_layer.1} parent=39 // pred_region
        %s882 = smul.u32 4, %s15
        %p883 = scmp.lt.s32.totalorder %s882, 7
        %s884 = scalar_select %p883, %s882, 7
        %s885 = smul.addr %s884, 8
        %s886 = scalar_lea.vmem %s3, %s885
      $region44: #{cluster_layer.1} parent=39 // pred_fallthru
        _
    $region40: #{cluster_layer.1} parent=5 // pred_fallthru
      _
  $region6: #{cluster_layer.1} parent=0 // loop_footer
    %s13 = sadd.s32 1, %s9
  $region7: #{cluster_layer.1} parent=0 // loop_footer_branch
    %8 = sbr.rel target = $region3
  $region8: #{cluster_layer.1} parent=0 // loop_exit
    _

</llo_original>
